<compile_context>
chip_gen: v7x
topology: tpu7x:2x2x1
jax: 0.10.0
libtpu: 0.0.40
codegen_flags: <defaults>
</compile_context>

<pallas_src>
import jax
import jax.numpy as jnp
from jax import lax
from jax.experimental import pallas as pl
from jax.experimental.pallas import tpu as pltpu

COUT = 4
KH = KW = 2          # conv1 kernel / stride
KHKW = KH * KW       # == H*W in the only valid spatial configuration (H=W=2)
PCOLS = KHKW + 1     # packed params: [ Wfull (4 cols) | Bfull ]


def _round_up(v, m):
    return ((v + m - 1) // m) * m


def fused_conv_add_relu_kernel(p_ref, x_ref, o_ref):
    # p_ref: (16, 5)  row c*4+p = [ 2*w1[c,:] + w2[c]*onehot(p) | 2*b1[c]+b2[c] ]
    # x_ref: (4, T)   column n = the 4 pixels of sample n (f32)
    # o_ref: (16, T)  row c*4+p = out[n, c, p]   (single lane-dense store)
    x = x_ref[...]
    acc = p_ref[:, KHKW:KHKW + 1] + p_ref[:, 0:1] * x[0:1, :]
    for k in range(1, KHKW):
        acc = acc + p_ref[:, k:k + 1] * x[k:k + 1, :]
    o_ref[...] = jnp.maximum(acc, 0.0)


def _pick_tile(n, lane_tile):
    """Lane tile (multiple of 128, VMEM-budgeted) and padded batch size."""
    lane_tile = max(128, _round_up(int(lane_tile), 128))     # robustness fix
    n128 = _round_up(max(int(n), 1), 128)
    if n128 <= lane_tile:
        # Whole batch fits one tile: split into two blocks when possible so the
        # "parallel" grid can shard across both TensorCores on v7x.
        tile = n128 if n128 <= 128 else _round_up((n128 + 1) // 2, 128)
    else:
        tile = lane_tile
    n_pad = _round_up(n128, tile)
    return tile, n_pad


def model_forward(x, w1, b1, w2, b2, *, lane_tile=65536):
    """x: (N, 1, H, W) f32 NCHW. Returns relu(2*conv1(x)+conv2(x)) as (N,4,H,W)."""
    N, C, H, W = x.shape
    assert C == 1
    OH, OW = (H - KH) // 2 + 1, (W - KW) // 2 + 1
    # PyTorch broadcast of v1 (N,4,OH,OW) + v2 (N,4,H,W) requires OH == OW == 1.
    assert OH == 1 and OW == 1, "module only runs (via broadcasting) when H=W=2"
    HWp = H * W                                      # == KHKW
    rows = HWp * COUT                                # 16 output rows

    tile, n_pad = _pick_tile(N, lane_tile)

    # (KHKW, n_pad): column n = sample n's whole 2x2 image (= conv1's only patch).
    x_cols = x.reshape(N, HWp).T.astype(jnp.float32)
    x_cols = jnp.pad(x_cols, ((0, 0), (0, n_pad - N)))

    # Fold ALL constants once into a single (16, 5) operand (one tiny DMA):
    # row c*4+p = [ 2*w1[c,:] + w2[c]*onehot(p) | 2*b1[c] + b2[c] ].
    w1f = w1.reshape(COUT, KHKW).astype(jnp.float32)
    w2f = w2.reshape(COUT).astype(jnp.float32)
    wfull = 2.0 * jnp.repeat(w1f, KHKW, axis=0)
    wfull = wfull + (jnp.tile(jnp.eye(KHKW, dtype=jnp.float32), (COUT, 1))
                     * jnp.repeat(w2f, KHKW)[:, None])
    bfull = jnp.repeat(2.0 * b1.astype(jnp.float32) + b2.astype(jnp.float32),
                       KHKW)[:, None]
    params = jnp.concatenate([wfull, bfull], axis=1)          # (16, 5)

    cost = pl.CostEstimate(
        flops=(2 * KHKW + 1) * rows * n_pad,                  # 4 FMAs + relu / row
        transcendentals=0,
        bytes_accessed=(KHKW + rows) * 4 * n_pad + rows * PCOLS * 4)

    flat = pl.pallas_call(
        fused_conv_add_relu_kernel,
        out_shape=jax.ShapeDtypeStruct((rows, n_pad), jnp.float32),
        grid=(n_pad // tile,),
        in_specs=[
            pl.BlockSpec((rows, PCOLS), lambda i: (0, 0)),    # params (resident)
            pl.BlockSpec((KHKW, tile), lambda i: (0, i)),     # x lane tile
        ],
        out_specs=pl.BlockSpec((rows, tile), lambda i: (0, i)),
        compiler_params=pltpu.CompilerParams(
            dimension_semantics=("parallel",)),
        cost_estimate=cost,
    )(params, x_cols)

    # Rows are channel-major (c*HWp + p), so NCHW is one 2-D transpose + a free
    # reshape. A consumer that accepts the packed (16, N) layout can skip it.
    return flat[:, :N].T.reshape(N, COUT, H, W)


model_forward_jit = jax.jit(model_forward, static_argnames=("lane_tile",))


def reference_forward(x, w1, b1, w2, b2):
    dn = ("NCHW", "OIHW", "NCHW")
    v1 = lax.conv_general_dilated(x, w1, (2, 2), "VALID", dimension_numbers=dn)
    v1 = v1 + b1[None, :, None, None]
    v2 = lax.conv_general_dilated(x, w2, (1, 1), "VALID", dimension_numbers=dn)
    v2 = v2 + b2[None, :, None, None]
    return jnp.maximum(v1 + v2 + v1, 0.0)


if __name__ == "__main__":
    key = jax.random.PRNGKey(0)
    kx, k1w, k1b, k2w, k2b = jax.random.split(key, 5)

    N, C, H, W = 2, 1, 2, 2
    x = jax.random.normal(kx, (N, C, H, W), dtype=jnp.float32)

    # deterministic parameter init (uniform, a la PyTorch default fan-in bound)
    bound1 = 1.0 / (C * KH * KW) ** 0.5
    w1 = jax.random.uniform(k1w, (COUT, C, KH, KW), jnp.float32, -bound1, bound1)
    b1 = jax.random.uniform(k1b, (COUT,), jnp.float32, -bound1, bound1)
    w2 = jax.random.uniform(k2w, (COUT, C, 1, 1), jnp.float32, -1.0, 1.0)
    b2 = jax.random.uniform(k2b, (COUT,), jnp.float32, -1.0, 1.0)

    # small case (matches the module's only valid configuration)
    out = jax.block_until_ready(model_forward_jit(x, w1, b1, w2, b2))
    ref = reference_forward(x, w1, b1, w2, b2)
    assert out.shape == (N, COUT, H, W), out.shape
    assert jnp.allclose(out, ref, atol=1e-5, rtol=1e-5)

    # larger batch: exercises the padded, multi-block parallel-grid path
    N2 = 300
    x_big = jax.random.normal(jax.random.PRNGKey(1), (N2, C, H, W),
                              dtype=jnp.float32)
    out2 = jax.block_until_ready(model_forward_jit(x_big, w1, b1, w2, b2))
    ref2 = reference_forward(x_big, w1, b1, w2, b2)
    assert out2.shape == (N2, COUT, H, W), out2.shape
    assert jnp.allclose(out2, ref2, atol=1e-5, rtol=1e-5)

    # robustness: non-multiple-of-128 lane_tile must be rounded, not rejected
    out3 = jax.block_until_ready(
        model_forward_jit(x_big, w1, b1, w2, b2, lane_tile=300))
    assert jnp.allclose(out3, ref2, atol=1e-5, rtol=1e-5)

    print("KERNEL_OK")
</pallas_src>

<mosaic_0001>
module attributes {stable_mosaic.version = 11 : i64} {
  func.func @fused_conv_add_relu_kernel(%arg0: i32, %arg1: memref<16x5xf32, #tpu.memory_space<vmem>>, %arg2: memref<4x128xf32, #tpu.memory_space<vmem>>, %arg3: memref<16x128xf32, #tpu.memory_space<vmem>>) attributes {dimension_semantics = [#tpu.dimension_semantics<parallel>], iteration_bounds = array<i64: 1>, scalar_prefetch = 0 : i64, scratch_operands = 0 : i64, tpu.core_type = #tpu.core_type<tc>, window_params = [{pipeline_mode = #tpu.pipeline_mode<synchronous>, transform_indices = @transform_0, window_bounds = array<i64: 16, 5>}, {transform_indices = @transform_1, window_bounds = array<i64: 4, 128>}, {transform_indices = @transform_2, window_bounds = array<i64: 16, 128>}]} {
    %c0 = arith.constant 0 : index
    %c0_0 = arith.constant 0 : index
    %0 = vector.load %arg2[%c0, %c0_0] : memref<4x128xf32, #tpu.memory_space<vmem>>, vector<4x128xf32>
    %c0_1 = arith.constant 0 : index
    %c4 = arith.constant 4 : index
    %1 = vector.load %arg1[%c0_1, %c4] : memref<16x5xf32, #tpu.memory_space<vmem>>, vector<16x1xf32>
    %c0_2 = arith.constant 0 : index
    %c0_3 = arith.constant 0 : index
    %2 = vector.load %arg1[%c0_2, %c0_3] : memref<16x5xf32, #tpu.memory_space<vmem>>, vector<16x1xf32>
    %3 = vector.extract_strided_slice %0 {offsets = [0, 0], sizes = [1, 128], strides = [1, 1]} : vector<4x128xf32> to vector<1x128xf32>
    %4 = vector.broadcast %2 : vector<16x1xf32> to vector<16x128xf32>
    %5 = vector.broadcast %3 : vector<1x128xf32> to vector<16x128xf32>
    %6 = arith.mulf %4, %5 : vector<16x128xf32>
    %7 = vector.broadcast %1 : vector<16x1xf32> to vector<16x128xf32>
    %8 = arith.addf %7, %6 : vector<16x128xf32>
    %c0_4 = arith.constant 0 : index
    %c1 = arith.constant 1 : index
    %9 = vector.load %arg1[%c0_4, %c1] : memref<16x5xf32, #tpu.memory_space<vmem>>, vector<16x1xf32>
    %10 = vector.extract_strided_slice %0 {offsets = [1, 0], sizes = [1, 128], strides = [1, 1]} : vector<4x128xf32> to vector<1x128xf32>
    %11 = vector.broadcast %9 : vector<16x1xf32> to vector<16x128xf32>
    %12 = vector.broadcast %10 : vector<1x128xf32> to vector<16x128xf32>
    %13 = arith.mulf %11, %12 : vector<16x128xf32>
    %14 = arith.addf %8, %13 : vector<16x128xf32>
    %c0_5 = arith.constant 0 : index
    %c2 = arith.constant 2 : index
    %15 = vector.load %arg1[%c0_5, %c2] : memref<16x5xf32, #tpu.memory_space<vmem>>, vector<16x1xf32>
    %16 = vector.extract_strided_slice %0 {offsets = [2, 0], sizes = [1, 128], strides = [1, 1]} : vector<4x128xf32> to vector<1x128xf32>
    %17 = vector.broadcast %15 : vector<16x1xf32> to vector<16x128xf32>
    %18 = vector.broadcast %16 : vector<1x128xf32> to vector<16x128xf32>
    %19 = arith.mulf %17, %18 : vector<16x128xf32>
    %20 = arith.addf %14, %19 : vector<16x128xf32>
    %c0_6 = arith.constant 0 : index
    %c3 = arith.constant 3 : index
    %21 = vector.load %arg1[%c0_6, %c3] : memref<16x5xf32, #tpu.memory_space<vmem>>, vector<16x1xf32>
    %22 = vector.extract_strided_slice %0 {offsets = [3, 0], sizes = [1, 128], strides = [1, 1]} : vector<4x128xf32> to vector<1x128xf32>
    %23 = vector.broadcast %21 : vector<16x1xf32> to vector<16x128xf32>
    %24 = vector.broadcast %22 : vector<1x128xf32> to vector<16x128xf32>
    %25 = arith.mulf %23, %24 : vector<16x128xf32>
    %26 = arith.addf %20, %25 : vector<16x128xf32>
    %cst = arith.constant 0.000000e+00 : f32
    %27 = vector.broadcast %cst : f32 to vector<16x128xf32>
    %28 = arith.maximumf %26, %27 : vector<16x128xf32>
    %c0_7 = arith.constant 0 : index
    %c0_8 = arith.constant 0 : index
    %29 = vector.load %arg3[%c0_7, %c0_8] : memref<16x128xf32, #tpu.memory_space<vmem>>, vector<16x128xf32>
    tpu.vector_store %arg3[%c0_7, %c0_8], %28 {strides = array<i32>} : memref<16x128xf32, #tpu.memory_space<vmem>>, vector<16x128xf32>,
    return
  }
  func.func @transform_0(%arg0: i32) -> (i32, i32) {
    %c0_i32 = arith.constant 0 : i32
    %c0_i32_0 = arith.constant 0 : i32
    %c0_i32_1 = arith.constant 0 : i32
    return %c0_i32, %c0_i32_0 : i32, i32
  }
  func.func @transform_1(%arg0: i32) -> (i32, i32) {
    %c0_i32 = arith.constant 0 : i32
    %c0_i32_0 = arith.constant 0 : i32
    return %c0_i32, %arg0 : i32, i32
  }
  func.func @transform_2(%arg0: i32) -> (i32, i32) {
    %c0_i32 = arith.constant 0 : i32
    %c0_i32_0 = arith.constant 0 : i32
    return %c0_i32, %arg0 : i32, i32
  }
}

</mosaic_0001>

<llo_original>
// kernel: mul.10
$region0: #{mul.10}
  %s0 = inlined_call_operand.vmem [shape: f32[4,4], index: 0, kind: input, shape index: {}]
  %s1 = inlined_call_operand.vmem [shape: f32[16], index: 1, kind: output, shape index: {}]
  $region1: #{mul.10} parent=0
    #allocation0 [shape = 'u8[4096]{0}', space=vmem, size = 0x1000, scoped, tag = 'scoped mem for output reshape']
    #allocation1 [shape = 'u8[4096]{0}', space=vmem, size = 0x1000, scoped, tag = 'scoped mem for input reshape']
    %s3 = sshllo.u32 0, 4
    %v4 = vld [vmem:[%s0] sm:%s3]
    %5 = vst [vmem:[#allocation1] sm:%s3] %v4
    %v6 = vld [vmem:[#allocation1] sm:$0x1]
    %vm7 = vcmask 31744
    %8 = vst.msk [vmem:[#allocation0] sm:$0x1] %vm7, %v6
    %s9 = scalar_lea.vmem [#allocation1], 3
    %v10 = vld [vmem:[%s9] sm:$0x1]
    %11 = vrot.lane.b32.xlu0 %v10, 12
    %v12 = vpop.permute.xlu0 %11
    %vm13 = vcmask 130144
    %14 = vst.msk [vmem:[#allocation0] sm:$0x1] %vm13, %v12
    %s15 = scalar_lea.vmem [#allocation1], 2
    %v16 = vld [vmem:[%s15] sm:$0x1]
    %17 = vrot.lane.b32.xlu0 %v16, 8
    %v18 = vpop.permute.xlu0 %17
    %vm19 = vcmask 97344
    %20 = vst.msk [vmem:[#allocation0] sm:$0x1] %vm19, %v18
    %s21 = scalar_lea.vmem [#allocation1], 1
    %v22 = vld [vmem:[%s21] sm:$0x1]
    %23 = vrot.lane.b32.xlu0 %v22, 4
    %v24 = vpop.permute.xlu0 %23
    %vm25 = vcmask 64544
    %26 = vst.msk [vmem:[#allocation0] sm:$0x1] %vm25, %v24
    %s28 = sshllo.u32 0, 1
    %v30 = vld [vmem:[#allocation0] sm:%s28]
    %s31 = sshllo.u32 0, 1
    %32 = vst [vmem:[%s1] sm:%s31] %v30

// kernel: model_forward.1
$region0: #{model_forward.1}
  #allocation0 [shape = 'u32[]', space=smem, size = 0x4, offset = 0x4, fixed_abs, tag = 'smem constant byte address 0x4 - core index']
  #allocation1 [shape = 'u32[144,128]{1,0:T(1,128)}', space=vmem, size = 0x12000, scoped, tag = 'internal scratch']
  %s0 = inlined_call_operand.vmem [shape: f32[16,5], index: 0, kind: input, shape index: {}]
  %s1 = inlined_call_operand.vmem [shape: f32[4,128], index: 1, kind: input, shape index: {}]
  %s2 = inlined_call_operand.vmem [shape: f32[16,128], index: 2, kind: output, shape index: {}]
  %s3 = sld [smem:[#allocation0]]
  $region18: #{model_forward.1} parent=0
    _
  %s5 = ssub.s32 1, %s3
  %s6 = scalar_select 0, %s5, %s3
  // Predicated region
  $region2: #{model_forward.1} parent=0 // pred_check
    _
  $region3: #{model_forward.1} parent=0 // pred_check_branch
    %8 = sbr.rel (0) target = $region5
  $region4: #{model_forward.1} parent=0 // pred_region
    _
  $region5: #{model_forward.1} parent=0 // pred_fallthru
    _
  // Predicated region
  $region6: #{model_forward.1} parent=0 // pred_check
    _
  $region7: #{model_forward.1} parent=0 // pred_check_branch
    %10 = sbr.rel (0) target = $region9
  $region8: #{model_forward.1} parent=0 // pred_region
    _
  $region9: #{model_forward.1} parent=0 // pred_fallthru
    _
  %v11 = vld [vmem:[%s1] sm:$0xf]
  %v12 = vld [vmem:[%s0] sm:$0xff]
  %v13 = vld [vmem:[%s0 + $0x8] sm:$0xff]
  %15 = vset.pattern.permute.xlu0 0
  %16 = vperm.xlu0 %15, %v12
  %v17 = vpop.permute.xlu0 %16
  %20 = vset.pattern.permute.xlu0 0
  %21 = vperm.xlu0 %20, %v13
  %v22 = vpop.permute.xlu0 %21
  %v24 = vlaneseq
  %v25 = vshrl.u32 %v24, 7
  %v26 = vsub.s32 0, %v25
  %v27 = vrot.slane %v11, %v26
  %v28 = vmul.f32 %v17, %v27
  %v29 = vmul.f32 %v22, %v27
  %30 = vset.pattern.permute.xlu0 4
  %31 = vperm.xlu0 %30, %v12
  %v32 = vpop.permute.xlu0 %31
  %34 = vset.pattern.permute.xlu0 4
  %35 = vperm.xlu0 %34, %v13
  %v36 = vpop.permute.xlu0 %35
  %v38 = vadd.f32 %v32, %v28
  %v39 = vadd.f32 %v36, %v29
  %40 = vset.pattern.permute.xlu0 1
  %41 = vperm.xlu0 %40, %v12
  %v42 = vpop.permute.xlu0 %41
  %44 = vset.pattern.permute.xlu0 1
  %45 = vperm.xlu0 %44, %v13
  %v46 = vpop.permute.xlu0 %45
  %v48 = vlaneseq
  %v49 = vshrl.u32 %v48, 7
  %v50 = vsub.s32 1, %v49
  %v51 = vrot.slane %v11, %v50
  %v52 = vmul.f32 %v42, %v51
  %v53 = vmul.f32 %v46, %v51
  %v54 = vadd.f32 %v38, %v52
  %v55 = vadd.f32 %v39, %v53
  %56 = vset.pattern.permute.xlu0 2
  %57 = vperm.xlu0 %56, %v12
  %v58 = vpop.permute.xlu0 %57
  %60 = vset.pattern.permute.xlu0 2
  %61 = vperm.xlu0 %60, %v13
  %v62 = vpop.permute.xlu0 %61
  %v64 = vlaneseq
  %v65 = vshrl.u32 %v64, 7
  %v66 = vsub.s32 2, %v65
  %v67 = vrot.slane %v11, %v66
  %v68 = vmul.f32 %v58, %v67
  %v69 = vmul.f32 %v62, %v67
  %v70 = vadd.f32 %v54, %v68
  %v71 = vadd.f32 %v55, %v69
  %72 = vset.pattern.permute.xlu0 3
  %73 = vperm.xlu0 %72, %v12
  %v74 = vpop.permute.xlu0 %73
  %76 = vset.pattern.permute.xlu0 3
  %77 = vperm.xlu0 %76, %v13
  %v78 = vpop.permute.xlu0 %77
  %v80 = vlaneseq
  %v81 = vshrl.u32 %v80, 7
  %v82 = vsub.s32 3, %v81
  %v83 = vrot.slane %v11, %v82
  %v84 = vmul.f32 %v74, %v83
  %v85 = vmul.f32 %v78, %v83
  %v86 = vadd.f32 %v70, %v84
  %v87 = vadd.f32 %v71, %v85
  %v88 = vmax.f32 %v86, 0.0
  %v89 = vmax.f32 %v87, 0.0
  %90 = vst [vmem:[%s2] sm:$0xff] %v88
  %91 = vst [vmem:[%s2 + $0x8] sm:$0xff] %v89
  // Predicated region
  $region10: #{model_forward.1} parent=0 // pred_check
    _
  $region11: #{model_forward.1} parent=0 // pred_check_branch
    %93 = sbr.rel (0) target = $region13
  $region12: #{model_forward.1} parent=0 // pred_region
    _
  $region13: #{model_forward.1} parent=0 // pred_fallthru
    _
  // Predicated region
  $region14: #{model_forward.1} parent=0 // pred_check
    _
  $region15: #{model_forward.1} parent=0 // pred_check_branch
    %95 = sbr.rel (0) target = $region17
  $region16: #{model_forward.1} parent=0 // pred_region
    _
  $region17: #{model_forward.1} parent=0 // pred_fallthru
    _

</llo_original>
